<compile_context>
chip_gen: v7x
topology: tpu7x:2x2x1
jax: 0.10.0
libtpu: 0.0.40
codegen_flags: <defaults>
</compile_context>

<pallas_src>
import functools

import jax
import jax.numpy as jnp
import numpy as np
from jax.experimental import pallas as pl
from jax.experimental.pallas import tpu as pltpu


def _round_up(x, m):
    return (x + m - 1) // m * m


def _soft_triple_kernel(emb_ref, lab_ref, w_ref, out_ref, *,
                        num_categories, cat_padded, num_centers,
                        delta, gamma_inv, lambda_):
    C, Cp, K = num_categories, cat_padded, num_centers

    emb = emb_ref[...]                                          # (TN, Dp) bf16
    # One wide MXU matmul with f32 accumulation: (TN, Dp) x (K*Cp, Dp)^T -> (TN, K*Cp).
    xw = jax.lax.dot_general(emb, w_ref[...], (((1,), (1,)), ((), ())),
                             preferred_element_type=jnp.float32)

    # Per-category soft assignment over the K centers (softmax along k, weighted by x).
    # Lane-aligned static column slices of the wide result; fused accumulation loop keeps
    # only {xw, m, denom, num} live (no s/e plane lists).
    m = xw[:, 0:Cp] * gamma_inv
    for k in range(1, K):
        m = jnp.maximum(m, xw[:, k * Cp:(k + 1) * Cp] * gamma_inv)
    denom = jnp.zeros_like(m)
    num = jnp.zeros_like(m)
    for k in range(K):
        xk = xw[:, k * Cp:(k + 1) * Cp]
        ek = jnp.exp(xk * gamma_inv - m)                        # EUP
        denom = denom + ek
        num = num + ek * xk
    h = num * pl.reciprocal(denom, approx=True)                 # (TN, Cp) f32

    # Margin + scaled cross entropy.  Padded rows carry label = -1 -> zero one-hot; padded
    # category columns are masked to a large negative before the LSE.
    labels = lab_ref[...]                                       # (TN, 1) int32
    class_ids = jax.lax.broadcasted_iota(jnp.int32, h.shape, 1)
    one_hot = (class_ids == labels).astype(jnp.float32)
    h = (h - delta * one_hot) * lambda_
    h = jnp.where(class_ids < C, h, jnp.float32(-1e30))
    hmax = jnp.max(h, axis=1, keepdims=True)
    lse = hmax + jnp.log(jnp.sum(jnp.exp(h - hmax), axis=1, keepdims=True))
    ce_sum = jnp.sum(one_hot * (lse - h))                       # this tile's CE numerator

    # Lane-dense scalar-broadcast store; the wrapper reads element [0, 0] of each tile block.
    out_ref[...] = jnp.full(out_ref.shape, ce_sum, dtype=jnp.float32)


def soft_triple_loss(embeddings, labels, weight, *, num_categories, num_centers,
                     similarity_margin=0.1, coef_regularizer1=0.01,
                     coef_regularizer2=0.01, coef_scale_softmax=1.0,
                     use_regularizer=True, tile_n=256, matmul_dtype=jnp.bfloat16):
    C, K = int(num_categories), int(num_centers)
    N, D = embeddings.shape
    assert weight.shape == (C * K, D)

    # ---- hoisted once-per-call: F.normalize(weight) in f32 ----
    w32 = weight.astype(jnp.float32)
    inv_norm = jax.lax.rsqrt(jnp.maximum(jnp.sum(w32 * w32, axis=1, keepdims=True), 1e-24))
    wn = w32 * inv_norm                                          # (C*K, D) f32

    # ---- cluster-variance regularizer: weights-only -> plain f32 JAX, outside the kernel ----
    use_reg = bool(use_regularizer) and K > 1    # K == 1 would zero the reg denominator
    if use_reg:
        wn_ckd = wn.reshape(C, K, D)
        gram = jnp.einsum('cid,cjd->cij', wn_ckd, wn_ckd)        # (C, K, K)
        sub = 1.0 - gram
        sub = jnp.where(sub <= 0.0, jnp.float32(1e-10), sub)
        triu = jnp.triu(jnp.ones((K, K), jnp.float32), k=1)
        var_loss = jnp.sum(triu * jnp.sqrt(2.0 * sub)) / (C * K * (K - 1))

    # ---- pad / reorder layouts for the kernel (lane-aligned operands) ----
    Dp = _round_up(D, 128)
    Cp = _round_up(C, 128)
    itemsize = jnp.dtype(matmul_dtype).itemsize
    # row c*K + k -> plane k, row c; pad each plane to (Cp, Dp); flatten k-major -> (K*Cp, Dp).
    wn_kcd = wn.reshape(C, K, D).transpose(1, 0, 2)              # (K, C, D)
    w_wide = jnp.pad(wn_kcd, ((0, 0), (0, Cp - C), (0, Dp - D))) \
               .reshape(K * Cp, Dp).astype(matmul_dtype)

    # ---- per-generation tile sizing / VMEM budget ----
    try:
        info = pltpu.get_tpu_info()
        phys_vmem = int(getattr(info, "vmem_capacity_bytes", 64 * 1024 * 1024))
    except Exception:
        phys_vmem = 64 * 1024 * 1024                             # conservative (v7x per-TC)
    weight_bytes = 2 * K * Cp * Dp * itemsize                    # Pallas double-buffers inputs
    per_row_bytes = (2 * Dp * itemsize + 2 * 4                   # emb + label blocks (2 bufs)
                     + (K + 4) * Cp * 4)                         # wide logits + m/denom/num/h
    budget = max(int(0.45 * phys_vmem) - weight_bytes, 2 * 1024 * 1024)
    tn_cap = max((budget // per_row_bytes) // 8 * 8, 8)
    tn = _round_up(max(min(int(tile_n), tn_cap, _round_up(N, 8)), 8), 8)
    n_pad = _round_up(N, tn)
    num_tiles = n_pad // tn

    emb = jnp.pad(embeddings.astype(matmul_dtype), ((0, n_pad - N), (0, Dp - D)))
    lab = jnp.pad(labels.reshape(N, 1).astype(jnp.int32), ((0, n_pad - N), (0, 0)),
                  constant_values=-1)

    kernel = functools.partial(
        _soft_triple_kernel,
        num_categories=C, cat_padded=Cp, num_centers=K,
        delta=float(similarity_margin),
        gamma_inv=float(1.0 / coef_regularizer1),
        lambda_=float(coef_scale_softmax))

    cost = pl.CostEstimate(
        flops=int(2 * n_pad * Dp * K * Cp + 10 * n_pad * K * Cp),
        transcendentals=int(n_pad * Cp * (K + 1) + n_pad),
        bytes_accessed=int(n_pad * Dp * itemsize + K * Cp * Dp * itemsize
                           + n_pad * 4 + num_tiles * 8 * 128 * 4))

    vmem_bytes = weight_bytes + tn * per_row_bytes + 2 * 8 * 128 * 4
    vmem_limit = int(min(max(2 * vmem_bytes, 32 * 1024 * 1024), int(0.85 * phys_vmem)))

    # TODO(synk): for large num_categories, add a second ("arbitrary") grid axis over category
    # blocks carrying online-LSE state in VMEM scratch instead of keeping the full (K*Cp, Dp)
    # center slab resident.
    partials = pl.pallas_call(
        kernel,
        out_shape=jax.ShapeDtypeStruct((num_tiles * 8, 128), jnp.float32),
        grid=(num_tiles,),
        in_specs=[
            pl.BlockSpec((tn, Dp), lambda i: (i, 0)),            # embeddings tile
            pl.BlockSpec((tn, 1), lambda i: (i, 0)),             # labels tile
            pl.BlockSpec((K * Cp, Dp), lambda i: (0, 0)),        # resident normalized centers
        ],
        out_specs=pl.BlockSpec((8, 128), lambda i: (i, 0)),      # per-tile partial (lane-dense)
        compiler_params=pltpu.CompilerParams(
            dimension_semantics=("parallel",),
            vmem_limit_bytes=vmem_limit),
        cost_estimate=cost,
    )(emb, lab, w_wide)

    clf_loss = jnp.sum(partials.reshape(num_tiles, 8, 128)[:, 0, 0]) / N
    if use_reg:
        return clf_loss + float(coef_regularizer2) * var_loss
    return clf_loss


def _reference(emb, labels, weight, C, K, delta=0.1, gamma_inv=100.0, tau=0.01, lam=1.0):
    """Pure-JAX float32 mirror of the PyTorch forward (for correctness checking)."""
    wn = weight / jnp.maximum(jnp.linalg.norm(weight, axis=1, keepdims=True), 1e-12)
    x = (emb @ wn.T).reshape(-1, C, K)
    h = (jax.nn.softmax(x * gamma_inv, axis=2) * x).sum(axis=2)
    one_hot = jax.nn.one_hot(labels, C, dtype=jnp.float32)
    h = (h - delta * one_hot) * lam
    logp = jax.nn.log_softmax(h, axis=1)
    clf = -(one_hot * logp).sum(axis=1).mean()
    mask = jnp.triu(jnp.ones((K, K), jnp.float32), k=1)
    var = 0.0
    for c in range(C):
        wc = wn[c * K:(c + 1) * K]
        sub = 1.0 - wc @ wc.T
        sub = jnp.where(sub <= 0.0, 1e-10, sub)
        var = var + (mask * jnp.sqrt(2.0 * sub)).sum()
    var = var / (C * K * (K - 1))
    return clf + tau * var


if __name__ == "__main__":
    key = jax.random.PRNGKey(0)

    # Config 1: single-tile, defaults (larger tau so the regularizer is visible in the check).
    N, D, C, K = 8, 32, 4, 2
    k_emb, k_lab, k_w, key = jax.random.split(key, 4)
    embeddings = jax.random.normal(k_emb, (N, D), dtype=jnp.float32)
    labels = jax.random.randint(k_lab, (N,), 0, C, dtype=jnp.int32)
    xavier_std = (2.0 / (D + C * K)) ** 0.5                     # deterministic xavier_normal_
    weight = xavier_std * jax.random.normal(k_w, (C * K, D), dtype=jnp.float32)

    tau = 0.5
    loss = jax.block_until_ready(
        soft_triple_loss(embeddings, labels, weight, num_categories=C, num_centers=K,
                         coef_regularizer2=tau))
    ref = _reference(embeddings, labels, weight, C, K, tau=tau)
    assert np.allclose(np.asarray(loss), np.asarray(ref), rtol=2e-2, atol=2e-2), (loss, ref)

    # Config 1b: regularizer disabled.
    loss_nr = jax.block_until_ready(
        soft_triple_loss(embeddings, labels, weight, num_categories=C, num_centers=K,
                         use_regularizer=False))
    ref_nr = _reference(embeddings, labels, weight, C, K, tau=0.0)
    assert np.allclose(np.asarray(loss_nr), np.asarray(ref_nr),
                       rtol=2e-2, atol=2e-2), (loss_nr, ref_nr)

    # Config 2: multi-tile grid (N not a multiple of the tile) with K = 3 centers.
    N2, D2, C2, K2 = 40, 32, 4, 3
    k_emb2, k_lab2, k_w2, key = jax.random.split(key, 4)
    emb2 = jax.random.normal(k_emb2, (N2, D2), dtype=jnp.float32)
    lab2 = jax.random.randint(k_lab2, (N2,), 0, C2, dtype=jnp.int32)
    w2 = ((2.0 / (D2 + C2 * K2)) ** 0.5) * jax.random.normal(k_w2, (C2 * K2, D2), jnp.float32)
    loss2 = jax.block_until_ready(
        soft_triple_loss(emb2, lab2, w2, num_categories=C2, num_centers=K2,
                         coef_regularizer2=tau, tile_n=16))
    ref2 = _reference(emb2, lab2, w2, C2, K2, tau=tau)
    assert np.allclose(np.asarray(loss2), np.asarray(ref2), rtol=2e-2, atol=2e-2), (loss2, ref2)

    print("KERNEL_OK")
</pallas_src>

<mosaic_0001>
module attributes {stable_mosaic.version = 11 : i64} {
  func.func @_soft_triple_kernel(%arg0: i32, %arg1: memref<8x128xbf16, #tpu.memory_space<vmem>>, %arg2: memref<8x1xi32, #tpu.memory_space<vmem>>, %arg3: memref<256x128xbf16, #tpu.memory_space<vmem>>, %arg4: memref<8x128xf32, #tpu.memory_space<vmem>>) attributes {dimension_semantics = [#tpu.dimension_semantics<parallel>], iteration_bounds = array<i64: 1>, scalar_prefetch = 0 : i64, scratch_operands = 0 : i64, tpu.core_type = #tpu.core_type<tc>, window_params = [{transform_indices = @transform_0, window_bounds = array<i64: 8, 128>}, {transform_indices = @transform_1, window_bounds = array<i64: 8, 1>}, {pipeline_mode = #tpu.pipeline_mode<synchronous>, transform_indices = @transform_2, window_bounds = array<i64: 256, 128>}, {transform_indices = @transform_3, window_bounds = array<i64: 8, 128>}]} {
    %c0 = arith.constant 0 : index
    %c0_0 = arith.constant 0 : index
    %0 = vector.load %arg1[%c0, %c0_0] : memref<8x128xbf16, #tpu.memory_space<vmem>>, vector<8x128xbf16>
    %c0_1 = arith.constant 0 : index
    %c0_2 = arith.constant 0 : index
    %1 = vector.load %arg3[%c0_1, %c0_2] : memref<256x128xbf16, #tpu.memory_space<vmem>>, vector<256x128xbf16>
    %cst = arith.constant dense<0.000000e+00> : vector<8x256xf32>
    %2 = tpu.matmul %0, %1, %cst {dimension_numbers = #tpu.dot_dimension_numbers<[1], [1], [0], [0], [0, 0, 1, 0], [], []>} : vector<8x128xbf16>, vector<256x128xbf16>, vector<8x256xf32> -> vector<8x256xf32>
    %3 = vector.extract_strided_slice %2 {offsets = [0, 0], sizes = [8, 128], strides = [1, 1]} : vector<8x256xf32> to vector<8x128xf32>
    %cst_3 = arith.constant 1.000000e+02 : f32
    %4 = vector.broadcast %cst_3 : f32 to vector<8x128xf32>
    %5 = arith.mulf %3, %4 : vector<8x128xf32>
    %6 = vector.extract_strided_slice %2 {offsets = [0, 128], sizes = [8, 128], strides = [1, 1]} : vector<8x256xf32> to vector<8x128xf32>
    %cst_4 = arith.constant 1.000000e+02 : f32
    %7 = vector.broadcast %cst_4 : f32 to vector<8x128xf32>
    %8 = arith.mulf %6, %7 : vector<8x128xf32>
    %9 = arith.maximumf %5, %8 : vector<8x128xf32>
    %cst_5 = arith.constant 0.000000e+00 : f32
    %10 = vector.broadcast %cst_5 : f32 to vector<8x128xf32>
    %cst_6 = arith.constant 0.000000e+00 : f32
    %11 = vector.broadcast %cst_6 : f32 to vector<8x128xf32>
    %12 = vector.extract_strided_slice %2 {offsets = [0, 0], sizes = [8, 128], strides = [1, 1]} : vector<8x256xf32> to vector<8x128xf32>
    %cst_7 = arith.constant 1.000000e+02 : f32
    %13 = vector.broadcast %cst_7 : f32 to vector<8x128xf32>
    %14 = arith.mulf %12, %13 : vector<8x128xf32>
    %15 = arith.subf %14, %9 : vector<8x128xf32>
    %16 = math.exp %15 : vector<8x128xf32>
    %17 = arith.addf %10, %16 : vector<8x128xf32>
    %18 = arith.mulf %16, %12 : vector<8x128xf32>
    %19 = arith.addf %11, %18 : vector<8x128xf32>
    %20 = vector.extract_strided_slice %2 {offsets = [0, 128], sizes = [8, 128], strides = [1, 1]} : vector<8x256xf32> to vector<8x128xf32>
    %cst_8 = arith.constant 1.000000e+02 : f32
    %21 = vector.broadcast %cst_8 : f32 to vector<8x128xf32>
    %22 = arith.mulf %20, %21 : vector<8x128xf32>
    %23 = arith.subf %22, %9 : vector<8x128xf32>
    %24 = math.exp %23 : vector<8x128xf32>
    %25 = arith.addf %17, %24 : vector<8x128xf32>
    %26 = arith.mulf %24, %20 : vector<8x128xf32>
    %27 = arith.addf %19, %26 : vector<8x128xf32>
    %28 = tpu.reciprocal %25 {approx = true} : vector<8x128xf32> -> vector<8x128xf32>
    %29 = arith.mulf %27, %28 : vector<8x128xf32>
    %c0_9 = arith.constant 0 : index
    %c0_10 = arith.constant 0 : index
    %30 = vector.load %arg2[%c0_9, %c0_10] : memref<8x1xi32, #tpu.memory_space<vmem>>, vector<8x1xi32>
    %31 = tpu.iota {dimensions = array<i32: 1>} : vector<8x128xi32>
    %32 = vector.broadcast %30 : vector<8x1xi32> to vector<8x128xi32>
    %33 = arith.cmpi eq, %31, %32 : vector<8x128xi32>
    %34 = arith.extui %33 : vector<8x128xi1> to vector<8x128xi32>
    %35 = arith.sitofp %34 : vector<8x128xi32> to vector<8x128xf32>
    %cst_11 = arith.constant 1.000000e-01 : f32
    %36 = vector.broadcast %cst_11 : f32 to vector<8x128xf32>
    %37 = arith.mulf %36, %35 : vector<8x128xf32>
    %38 = arith.subf %29, %37 : vector<8x128xf32>
    %cst_12 = arith.constant 1.000000e+00 : f32
    %39 = vector.broadcast %cst_12 : f32 to vector<8x128xf32>
    %40 = arith.mulf %38, %39 : vector<8x128xf32>
    %c4_i32 = arith.constant 4 : i32
    %41 = vector.broadcast %c4_i32 : i32 to vector<8x128xi32>
    %42 = arith.cmpi slt, %31, %41 : vector<8x128xi32>
    %cst_13 = arith.constant -1.000000e+30 : f32
    %43 = vector.broadcast %cst_13 : f32 to vector<8x128xf32>
    %44 = arith.select %42, %40, %43 : vector<8x128xi1>, vector<8x128xf32>
    %cst_14 = arith.constant dense<0xFF800000> : vector<8xf32>
    %45 = vector.multi_reduction <maximumf>, %44, %cst_14 [1] : vector<8x128xf32> to vector<8xf32>
    %46 = vector.shape_cast %45 : vector<8xf32> to vector<8x1xf32>
    %47 = vector.broadcast %46 : vector<8x1xf32> to vector<8x128xf32>
    %48 = arith.subf %44, %47 : vector<8x128xf32>
    %49 = math.exp %48 : vector<8x128xf32>
    %cst_15 = arith.constant dense<0.000000e+00> : vector<8xf32>
    %50 = vector.multi_reduction <add>, %49, %cst_15 [1] : vector<8x128xf32> to vector<8xf32>
    %51 = vector.shape_cast %50 : vector<8xf32> to vector<8x1xf32>
    %52 = math.log %51 : vector<8x1xf32>
    %53 = arith.addf %46, %52 : vector<8x1xf32>
    %54 = vector.broadcast %53 : vector<8x1xf32> to vector<8x128xf32>
    %55 = arith.subf %54, %44 : vector<8x128xf32>
    %56 = arith.mulf %35, %55 : vector<8x128xf32>
    %57 = vector.shape_cast %56 : vector<8x128xf32> to vector<1x8x128xf32>
    %cst_16 = arith.constant dense<0.000000e+00> : vector<1xf32>
    %58 = vector.multi_reduction <add>, %57, %cst_16 [1, 2] : vector<1x8x128xf32> to vector<1xf32>
    %59 = vector.shape_cast %58 : vector<1xf32> to vector<1x1x1xf32>
    %60 = vector.extract %59[0, 0, 0] : f32 from vector<1x1x1xf32>
    %61 = vector.broadcast %60 : f32 to vector<8x128xf32>
    %c0_17 = arith.constant 0 : index
    %c0_18 = arith.constant 0 : index
    %62 = vector.load %arg4[%c0_17, %c0_18] : memref<8x128xf32, #tpu.memory_space<vmem>>, vector<8x128xf32>
    tpu.vector_store %arg4[%c0_17, %c0_18], %61 {strides = array<i32>} : memref<8x128xf32, #tpu.memory_space<vmem>>, vector<8x128xf32>,
    return
  }
  func.func @transform_0(%arg0: i32) -> (i32, i32) {
    %c0_i32 = arith.constant 0 : i32
    %c0_i32_0 = arith.constant 0 : i32
    return %arg0, %c0_i32 : i32, i32
  }
  func.func @transform_1(%arg0: i32) -> (i32, i32) {
    %c0_i32 = arith.constant 0 : i32
    %c0_i32_0 = arith.constant 0 : i32
    return %arg0, %c0_i32 : i32, i32
  }
  func.func @transform_2(%arg0: i32) -> (i32, i32) {
    %c0_i32 = arith.constant 0 : i32
    %c0_i32_0 = arith.constant 0 : i32
    %c0_i32_1 = arith.constant 0 : i32
    return %c0_i32, %c0_i32_0 : i32, i32
  }
  func.func @transform_3(%arg0: i32) -> (i32, i32) {
    %c0_i32 = arith.constant 0 : i32
    %c0_i32_0 = arith.constant 0 : i32
    return %arg0, %c0_i32 : i32, i32
  }
}

</mosaic_0001>

<llo_original>
// kernel: tpu_custom_call.1
$region0: #{tpu_custom_call.1}
  #allocation0 [shape = 'u32[]', space=smem, size = 0x4, offset = 0x4, fixed_abs, tag = 'smem constant byte address 0x4 - core index']
  #allocation1 [shape = 'u32[144,128]{1,0:T(1,128)}', space=vmem, size = 0x12000, scoped, tag = 'internal scratch']
  %s0 = inlined_call_operand.vmem [shape: bf16[8,128], index: 0, kind: input, shape index: {}]
  %s1 = inlined_call_operand.vmem [shape: s32[8,1], index: 1, kind: input, shape index: {}]
  %s2 = inlined_call_operand.hbm [shape: bf16[256,128], index: 2, kind: input, shape index: {}]
  %s3 = inlined_call_operand.hbm [shape: f32[8,128], index: 3, kind: output, shape index: {}]
  %s4 = sld [smem:[#allocation0]]
  $region26: #{tpu_custom_call.1} parent=0
    _
  %s6 = ssub.s32 1, %s4
  %s7 = scalar_select 0, %s6, %s4
  $region1: #{tpu_custom_call.1} parent=0
    #allocation2 [shape = 'u8[65536]{0}', space=vmem, size = 0x10000, scoped, tag = 'input window, operand 2, single buffered']
    #allocation3 [shape = 's32[1]{0}', space=sflag, size = 0x4, scoped, tag = 'scoped memory for tpu_custom_call.1']
    #allocation4 [shape = 's32[1]{0}', space=sflag, size = 0x4, scoped, tag = 'scoped memory for tpu_custom_call.1']
    #allocation5 [shape = 'u8[4096]{0}', space=vmem, size = 0x1000, scoped, tag = 'output window, operand 0, single buffered']
    %8 = vsyncpa [#allocation3], 0
    %9 = vsyncpa [#allocation4], 0
    // Predicated region
    $region2: #{tpu_custom_call.1} parent=1 // pred_check
      _
    $region3: #{tpu_custom_call.1} parent=1 // pred_check_branch
      %11 = sbr.rel (0) target = $region5
    $region4: #{tpu_custom_call.1} parent=1 // pred_region
      _
    $region5: #{tpu_custom_call.1} parent=1 // pred_fallthru
      _
    // Predicated region
    $region6: #{tpu_custom_call.1} parent=1 // pred_check
      _
    $region7: #{tpu_custom_call.1} parent=1 // pred_check_branch
      %13 = sbr.rel (0) target = $region9
    $region8: #{tpu_custom_call.1} parent=1 // pred_region
      _
    $region9: #{tpu_custom_call.1} parent=1 // pred_fallthru
      _
    // Predicated region
    $region10: #{tpu_custom_call.1} parent=1 // pred_check
      _
    $region11: #{tpu_custom_call.1} parent=1 // pred_check_branch
      %15 = sbr.rel (0) target = $region13
    $region12: #{tpu_custom_call.1} parent=1 // pred_region
      %s17 = ssub.s32 2048, 2048
      %18 = vsyncadd [#allocation3], %s17
      %s19 = sshll.u32 [#allocation2], 4
      %s20 = int_to_ptr.vmem [resolvable:$true] %s19
      %25 = dma.hbm_to_vmem [thread:$0]  %s2, 2048, %s20, [#allocation3], 64, 64, 4
    $region13: #{tpu_custom_call.1} parent=1 // pred_fallthru
      _
    // Predicated region
    $region14: #{tpu_custom_call.1} parent=1 // pred_check
      _
    $region15: #{tpu_custom_call.1} parent=1 // pred_check_branch
      %27 = sbr.rel (0) target = $region17
    $region16: #{tpu_custom_call.1} parent=1 // pred_region
      %28 = dma.done [#allocation3], 2048
    $region17: #{tpu_custom_call.1} parent=1 // pred_fallthru
      _
    %v30 = vld [vmem:[%s0] sm:$0xf]
    %v31 = vld [vmem:[#allocation2] sm:$0xf]
    %v32 = vld [vmem:[#allocation2 + $0x4] sm:$0xf]
    %v33 = vld [vmem:[#allocation2 + $0x8] sm:$0xf]
    %v34 = vld [vmem:[#allocation2 + $0xc] sm:$0xf]
    %v35 = vld [vmem:[#allocation2 + $0x10] sm:$0xf]
    %v36 = vld [vmem:[#allocation2 + $0x14] sm:$0xf]
    %v37 = vld [vmem:[#allocation2 + $0x18] sm:$0xf]
    %v38 = vld [vmem:[#allocation2 + $0x1c] sm:$0xf]
    %v39 = vld [vmem:[#allocation2 + $0x20] sm:$0xf]
    %v40 = vld [vmem:[#allocation2 + $0x24] sm:$0xf]
    %v41 = vld [vmem:[#allocation2 + $0x28] sm:$0xf]
    %v42 = vld [vmem:[#allocation2 + $0x2c] sm:$0xf]
    %v43 = vld [vmem:[#allocation2 + $0x30] sm:$0xf]
    %v44 = vld [vmem:[#allocation2 + $0x34] sm:$0xf]
    %v45 = vld [vmem:[#allocation2 + $0x38] sm:$0xf]
    %v46 = vld [vmem:[#allocation2 + $0x3c] sm:$0xf]
    %v47 = vld [vmem:[#allocation2 + $0x40] sm:$0xf]
    %v48 = vld [vmem:[#allocation2 + $0x44] sm:$0xf]
    %v49 = vld [vmem:[#allocation2 + $0x48] sm:$0xf]
    %v50 = vld [vmem:[#allocation2 + $0x4c] sm:$0xf]
    %v51 = vld [vmem:[#allocation2 + $0x50] sm:$0xf]
    %v52 = vld [vmem:[#allocation2 + $0x54] sm:$0xf]
    %v53 = vld [vmem:[#allocation2 + $0x58] sm:$0xf]
    %v54 = vld [vmem:[#allocation2 + $0x5c] sm:$0xf]
    %v55 = vld [vmem:[#allocation2 + $0x60] sm:$0xf]
    %v56 = vld [vmem:[#allocation2 + $0x64] sm:$0xf]
    %v57 = vld [vmem:[#allocation2 + $0x68] sm:$0xf]
    %v58 = vld [vmem:[#allocation2 + $0x6c] sm:$0xf]
    %v59 = vld [vmem:[#allocation2 + $0x70] sm:$0xf]
    %v60 = vld [vmem:[#allocation2 + $0x74] sm:$0xf]
    %v61 = vld [vmem:[#allocation2 + $0x78] sm:$0xf]
    %v62 = vld [vmem:[#allocation2 + $0x7c] sm:$0xf]
    %v95 = vunpack.c.l.b16 %v31
    %v96 = vunpack.c.l.b16 %v32
    %v97 = vunpack.c.l.b16 %v33
    %v98 = vunpack.c.l.b16 %v34
    %v99 = vunpack.c.l.b16 %v35
    %v100 = vunpack.c.l.b16 %v36
    %v101 = vunpack.c.l.b16 %v37
    %v102 = vunpack.c.l.b16 %v38
    %v103 = vunpack.c.l.b16 %v39
    %v104 = vunpack.c.l.b16 %v40
    %v105 = vunpack.c.l.b16 %v41
    %v106 = vunpack.c.l.b16 %v42
    %v107 = vunpack.c.l.b16 %v43
    %v108 = vunpack.c.l.b16 %v44
    %v109 = vunpack.c.l.b16 %v45
    %v110 = vunpack.c.l.b16 %v46
    %v111 = vunpack.c.l.b16 %v47
    %v112 = vunpack.c.l.b16 %v48
    %v113 = vunpack.c.l.b16 %v49
    %v114 = vunpack.c.l.b16 %v50
    %v115 = vunpack.c.l.b16 %v51
    %v116 = vunpack.c.l.b16 %v52
    %v117 = vunpack.c.l.b16 %v53
    %v118 = vunpack.c.l.b16 %v54
    %v119 = vunpack.c.l.b16 %v55
    %v120 = vunpack.c.l.b16 %v56
    %v121 = vunpack.c.l.b16 %v57
    %v122 = vunpack.c.l.b16 %v58
    %v123 = vunpack.c.l.b16 %v59
    %v124 = vunpack.c.l.b16 %v60
    %v125 = vunpack.c.l.b16 %v61
    %v126 = vunpack.c.l.b16 %v62
    %v127 = vpack.c.b16 %v96, %v95
    %v128 = vpack.c.b16 %v98, %v97
    %v129 = vpack.c.b16 %v100, %v99
    %v130 = vpack.c.b16 %v102, %v101
    %v131 = vpack.c.b16 %v104, %v103
    %v132 = vpack.c.b16 %v106, %v105
    %v133 = vpack.c.b16 %v108, %v107
    %v134 = vpack.c.b16 %v110, %v109
    %v135 = vpack.c.b16 %v112, %v111
    %v136 = vpack.c.b16 %v114, %v113
    %v137 = vpack.c.b16 %v116, %v115
    %v138 = vpack.c.b16 %v118, %v117
    %v139 = vpack.c.b16 %v120, %v119
    %v140 = vpack.c.b16 %v122, %v121
    %v141 = vpack.c.b16 %v124, %v123
    %v142 = vpack.c.b16 %v126, %v125
    %159 = vmatprep.subr.bf16.mxu0 0
    %160 = vmatpush1.bf16.xpose.msra.mxu0 %v127
    %161 = vmatprep.subr.bf16.mxu0 0
    %162 = vmatpush1.bf16.xpose.msra.mxu0 %v128
    %163 = vmatprep.subr.bf16.mxu0 0
    %164 = vmatpush1.bf16.xpose.msra.mxu0 %v129
    %165 = vmatprep.subr.bf16.mxu0 0
    %166 = vmatpush1.bf16.xpose.msra.mxu0 %v130
    %167 = vmatprep.subr.bf16.mxu0 0
    %168 = vmatpush1.bf16.xpose.msra.mxu0 %v131
    %169 = vmatprep.subr.bf16.mxu0 0
    %170 = vmatpush1.bf16.xpose.msra.mxu0 %v132
    %171 = vmatprep.subr.bf16.mxu0 0
    %172 = vmatpush1.bf16.xpose.msra.mxu0 %v133
    %173 = vmatprep.subr.bf16.mxu0 0
    %174 = vmatpush1.bf16.xpose.msra.mxu0 %v134
    %175 = vmatprep.subr.bf16.mxu0 0
    %176 = vmatpush1.bf16.xpose.msra.mxu0 %v135
    %177 = vmatprep.subr.bf16.mxu0 0
    %178 = vmatpush1.bf16.xpose.msra.mxu0 %v136
    %179 = vmatprep.subr.bf16.mxu0 0
    %180 = vmatpush1.bf16.xpose.msra.mxu0 %v137
    %181 = vmatprep.subr.bf16.mxu0 0
    %182 = vmatpush1.bf16.xpose.msra.mxu0 %v138
    %183 = vmatprep.subr.bf16.mxu0 0
    %184 = vmatpush1.bf16.xpose.msra.mxu0 %v139
    %185 = vmatprep.subr.bf16.mxu0 0
    %186 = vmatpush1.bf16.xpose.msra.mxu0 %v140
    %187 = vmatprep.subr.bf16.mxu0 0
    %188 = vmatpush1.bf16.xpose.msra.mxu0 %v141
    %189 = vmatprep.subr.bf16.mxu0 0
    %190 = vmatpush1.bf16.xpose.msra.mxu0 %v142
    %191 = vmatprep.mubr.bf16.mxu0 0
    %192 = vmatmul.mubr.bf16.gmra.mrb[0].mxu0 %v30
    %v193 = vpop.f32.mrb[0].mxu0
    %v194 = vadd.f32 0.0, %v193
    %v195 = vpop.f32.mrb[0].mxu0
    %v196 = vadd.f32 0.0, %v195
    %v197 = vpop.f32.mrb[0].mxu0
    %v198 = vpop.f32.mrb[0].mxu0
    %199 = vdwg.mxu0
    %v200 = vmul.f32 %v194, 100.0
    %v201 = vmul.f32 %v196, 100.0
    %v202 = vmax.f32 %v200, %v201
    %v203 = vsub.f32 %v200, %v202
    %v204 = vmul.f32 %v203, 1.442695
    %v205 = vpow.pop %v204
    %v206 = vadd.f32 %v205, 0.0
    %v207 = vmul.f32 %v205, %v194
    %v208 = vadd.f32 %v207, 0.0
    %v209 = vsub.f32 %v201, %v202
    %v210 = vmul.f32 %v209, 1.442695
    %v211 = vpow.pop %v210
    %v212 = vadd.f32 %v206, %v211
    %v213 = vmul.f32 %v211, %v196
    %v214 = vadd.f32 %v208, %v213
    %v215 = vrcp.pop %v212
    %v216 = vmul.f32 %v214, %v215
    %v217 = vld [vmem:[%s1] sm:$0xff]
    %v218 = vlaneseq
    %v219 = vand.u32 %v218, 127
    %220 = vset.pattern.permute.xlu0 0
    %221 = vperm.xlu0 %220, %v217
    %v222 = vpop.permute.xlu0 %221
    %vm223 = vcmp.eq.s32.totalorder %v219, %v222
    %v224 = vsel %vm223, 1, 0
    %v225 = vcvt.s32.f32 %v224
    %v226 = vmul.f32 %v225, 0.1
    %v227 = vsub.f32 %v216, %v226
    %vm228 = vcmp.lt.s32.totalorder %v219, 4
    %v229 = vsel %vm228, %v227, -1e+30
    %230 = vmax.xlane.f32.xlu0 %v229
    %v231 = vpop.xlane.xlu0 %230
    %v232 = vsub.f32 %v229, %v231
    %v233 = vmul.f32 %v232, 1.442695
    %v234 = vpow.pop %v233
    %235 = vadd.xlane.f32.xlu0 %v234
    %v236 = vpop.xlane.xlu0 %235
    %v237 = vlog2.pop %v236
    %v238 = vmul.f32 %v237, 0.6931472
    %v239 = vadd.f32 %v231, %v238
    %v240 = vsub.f32 %v239, %v229
    %v241 = vmul.f32 %v225, %v240
    %242 = vadd.xlane.f32.xlu0 %v241
    %v243 = vpop.xlane.xlu0 %242
    %v244 = vrot.slane %v243, 4
    %v245 = vadd.f32 %v243, %v244
    %v246 = vrot.slane %v245, 2
    %v247 = vadd.f32 %v245, %v246
    %v248 = vrot.slane %v247, 1
    %v249 = vadd.f32 %v247, %v248
    %s250 = vtos %v249
    %v251 = vstv %s250
    %252 = vst [vmem:[#allocation5] sm:$0xff] %v251
    // Predicated region
    $region18: #{tpu_custom_call.1} parent=1 // pred_check
      _
    $region19: #{tpu_custom_call.1} parent=1 // pred_check_branch
      %254 = sbr.rel (0) target = $region21
    $region20: #{tpu_custom_call.1} parent=1 // pred_region
      %s256 = ssub.s32 128, 128
      %257 = vsyncadd [#allocation4], %s256
      %s259 = sshll.u32 [#allocation5], 4
      %s260 = int_to_ptr.vmem [resolvable:$true] %s259
      %262 = dma.vmem_to_hbm [thread:$0]  %s260, 128, %s3, [#allocation4]
    $region21: #{tpu_custom_call.1} parent=1 // pred_fallthru
      _
    // Predicated region
    $region22: #{tpu_custom_call.1} parent=1 // pred_check
      _
    $region23: #{tpu_custom_call.1} parent=1 // pred_check_branch
      %264 = sbr.rel (0) target = $region25
    $region24: #{tpu_custom_call.1} parent=1 // pred_region
      %265 = dma.done [#allocation4], 128
    $region25: #{tpu_custom_call.1} parent=1 // pred_fallthru
      _
    %266 = vsyncpa [#allocation3], 1
    %267 = vsyncpa [#allocation4], 1

</llo_original>
